<compile_context>
chip_gen: v6e
topology: v6e:2x2x1
jax: 0.10.0
libtpu: 0.0.40
codegen_flags: <defaults>
</compile_context>

<pallas_src>
import functools

import jax
import jax.numpy as jnp
from jax import lax
from jax.experimental import pallas as pl
from jax.experimental.pallas import tpu as pltpu


def _jca_kernel(xcol_ref, x_ref, w13_ref, wavg_ref, w2f_ref, w4_ref, ball_ref,
                out_ref, *, K, pad, C, mid1, mid2, rows13, off2, off4,
                NB, T, T_out, V):
    f32 = jnp.float32
    bf16 = jnp.bfloat16
    NBT = NB * T_out
    NBV = NB * V

    # --- consolidated biases (one small f32 input; all slices 8-row aligned) ---
    b13 = ball_ref[0:rows13, :]              # rows: [b1 | b3 | zero pad]
    bias2 = ball_ref[off2:off2 + mid2, :]    # (mid2, 1)
    bias4 = ball_ref[off4:off4 + C, :]       # (C, 1)

    xc = xcol_ref[0]                         # (K*C, NB*T_out*V)  bf16 im2col slab

    # --- conv1 + conv3 fused: one bf16 MXU push over the shared slab ---------
    y13 = jnp.dot(w13_ref[...], xc, preferred_element_type=f32) + b13
    y13 = jnp.maximum(y13, 0.0)              # (rows13, NB*T_out*V), f32

    # --- mean over V (conv1 branch) and mean over T (conv3 branch) as ONE
    #     matmul against the concatenated averaging matrix -------------------
    res = jnp.dot(y13.astype(bf16), wavg_ref[...], preferred_element_type=f32)
    # res: (rows13, NBT + NBV)
    x2m = res[mid1:mid1 + mid2, NBT:NBT + NBV]          # (mid2, NB*V)

    # --- conv2 (temporal K, stride 1): single matmul over a shifted stack ----
    # Rows >= mid1 of x1m8 are don't-care; the matching w2f columns are zero.
    TP = T_out + 2 * pad
    x1m8 = res[:, 0:NBT]                                # (rows13, NB*T_out)
    zpad = jnp.zeros((rows13, pad), f32)
    segs = []
    for n in range(NB):
        segs += [zpad, x1m8[:, n * T_out:(n + 1) * T_out], zpad]
    x1p = jnp.concatenate(segs, axis=1)                 # (rows13, NB*TP), lane concat
    blocks = []
    for k in range(K):
        cols = [x1p[:, n * TP + k:n * TP + k + T_out] for n in range(NB)]
        blocks.append(cols[0] if NB == 1 else jnp.concatenate(cols, axis=1))
    x1sh = jnp.concatenate(blocks, axis=0)              # (K*rows13, NBT), 8-aligned
    z = jnp.dot(w2f_ref[...], x1sh.astype(bf16), preferred_element_type=f32) + bias2
    z = jnp.maximum(z, 0.0)                             # (mid2, NB*T_out)

    # --- tail (tiny, per batch element): mean over T, add, conv4 + sigmoid,
    #     lane-dense gate of the input ----------------------------------------
    for n in range(NB):
        x1r = jnp.mean(z[:, n * T_out:(n + 1) * T_out], axis=1, keepdims=True)  # (mid2,1)
        x2 = x1r + x2m[:, n * V:(n + 1) * V]                                    # (mid2,V)
        a = jax.nn.sigmoid(
            jnp.dot(w4_ref[...], x2, preferred_element_type=f32) + bias4)       # (C, V)
        # out last dim is T*V (lane dense); flat index t*V+v -> gate a[:, v].
        out_ref[0, n] = x_ref[0, n] * jnp.tile(a, (1, T))


def jca_pallas(x, params, *, kernel_size=5, stride=2, batch_tiles=1):
    """JCA forward.  `batch_tiles` = number of grid programs over the batch.
    Default 1 folds the whole batch into the matmul lane dimension (best on
    single-TensorCore v5e/v6e); use 2 on v7x to shard across both TensorCores."""
    w1, b1, w2, b2, w3, b3, w4, b4 = params
    N, C, T, V = x.shape
    K = kernel_size
    pad = K // 2
    T_out = (T + 2 * pad - K) // stride + 1
    mid1 = w1.shape[0]
    mid2 = w2.shape[0]
    assert N % batch_tiles == 0
    G = batch_tiles
    NB = N // G
    f32, bf16 = jnp.float32, jnp.bfloat16

    rows13 = ((mid1 + mid2 + 7) // 8) * 8        # padded row count for stacked conv1/conv3
    off2 = rows13                                # 8-aligned offsets into the bias vector
    off4 = rows13 + ((mid2 + 7) // 8) * 8
    btot = off4 + ((C + 7) // 8) * 8

    # ---- glue: strided temporal im2col, batch folded into the lane axis ----
    x_pad = jnp.pad(x, ((0, 0), (0, 0), (pad, pad), (0, 0)))
    cols = [x_pad[:, :, k:k + stride * (T_out - 1) + 1:stride, :] for k in range(K)]
    xcol = jnp.stack(cols, axis=1).reshape(N, K * C, T_out, V)
    xcol = xcol.reshape(G, NB, K * C, T_out, V).transpose(0, 2, 1, 3, 4)
    xcol = xcol.reshape(G, K * C, NB * T_out * V).astype(bf16)

    # gated input / output kept lane-dense: last dim T*V
    xflat = x.reshape(G, NB, C, T * V)

    # ---- glue: weight re-layout (bf16 MXU inputs, f32 elementwise) ----------
    w1f = jnp.transpose(w1[:, :, :, 0], (0, 2, 1)).reshape(mid1, K * C)
    w3f = jnp.transpose(w3[:, :, :, 0], (0, 2, 1)).reshape(mid2, K * C)
    w13 = (jnp.zeros((rows13, K * C), f32)
           .at[:mid1].set(w1f).at[mid1:mid1 + mid2].set(w3f)).astype(bf16)

    w2r = jnp.transpose(w2[:, :, :, 0], (0, 2, 1))                   # (mid2, K, mid1)
    w2f = (jnp.zeros((mid2, K, rows13), f32)
           .at[:, :, :mid1].set(w2r)).reshape(mid2, K * rows13).astype(bf16)

    w4m = w4[:, :, 0, 0].astype(f32)                                 # (C, mid2), tiny -> f32

    ball = jnp.zeros((btot, 1), f32)
    ball = ball.at[0:mid1, 0].set(b1).at[mid1:mid1 + mid2, 0].set(b3)
    ball = ball.at[off2:off2 + mid2, 0].set(b2).at[off4:off4 + C, 0].set(b4)

    # averaging matrices (block-diagonal over the folded batch), concatenated
    # so both reductions run as a single MXU matmul; 1/V and 1/T_out folded in.
    NBT, NBV = NB * T_out, NB * V
    avgV = jnp.kron(jnp.eye(NBT, dtype=f32), jnp.ones((V, 1), f32)) / V
    avgT = jnp.kron(jnp.eye(NB, dtype=f32),
                    jnp.kron(jnp.ones((T_out, 1), f32), jnp.eye(V, dtype=f32))) / T_out
    wavg = jnp.concatenate([avgV, avgT], axis=1).astype(bf16)        # (NB*T_out*V, NBT+NBV)

    kern = functools.partial(_jca_kernel, K=K, pad=pad, C=C, mid1=mid1, mid2=mid2,
                             rows13=rows13, off2=off2, off4=off4,
                             NB=NB, T=T, T_out=T_out, V=V)

    out = pl.pallas_call(
        kern,
        out_shape=jax.ShapeDtypeStruct((G, NB, C, T * V), f32),
        grid=(G,),
        in_specs=[
            pl.BlockSpec((1, K * C, NB * T_out * V), lambda g: (g, 0, 0)),   # xcol (bf16)
            pl.BlockSpec((1, NB, C, T * V), lambda g: (g, 0, 0, 0)),         # x (f32)
            pl.BlockSpec((rows13, K * C), lambda g: (0, 0)),                 # w13 (bf16)
            pl.BlockSpec((NB * T_out * V, NBT + NBV), lambda g: (0, 0)),     # wavg (bf16)
            pl.BlockSpec((mid2, K * rows13), lambda g: (0, 0)),              # w2f (bf16)
            pl.BlockSpec((C, mid2), lambda g: (0, 0)),                       # w4 (f32)
            pl.BlockSpec((btot, 1), lambda g: (0, 0)),                       # biases (f32)
        ],
        out_specs=pl.BlockSpec((1, NB, C, T * V), lambda g: (g, 0, 0, 0)),
        compiler_params=pltpu.CompilerParams(dimension_semantics=("parallel",)),
    )(xcol, xflat, w13, wavg, w2f, w4m, ball)
    return out.reshape(N, C, T, V)


def jca_ref(x, params, *, kernel_size=5, stride=2):
    """Pure-JAX reference matching the PyTorch forward exactly (NCHW / OIHW)."""
    w1, b1, w2, b2, w3, b3, w4, b4 = params
    pad = kernel_size // 2

    def conv(inp, w, b, strides, padding):
        out = lax.conv_general_dilated(inp, w, window_strides=strides, padding=padding,
                                       precision=lax.Precision.HIGHEST)
        return out + b.reshape(1, -1, 1, 1)

    x1 = jax.nn.relu(conv(x, w1, b1, (stride, 1), ((pad, pad), (0, 0)))).mean(-1, keepdims=True)
    x1 = jax.nn.relu(conv(x1, w2, b2, (1, 1), ((pad, pad), (0, 0)))).mean(-2, keepdims=True)
    x2 = jax.nn.relu(conv(x, w3, b3, (stride, 1), ((pad, pad), (0, 0)))).mean(-2, keepdims=True)
    x2 = x1 + x2
    x2 = jax.nn.sigmoid(conv(x2, w4, b4, (1, 1), ((0, 0), (0, 0))))
    return x * x2


if __name__ == "__main__":
    key = jax.random.PRNGKey(0)
    N, C, T, V = 2, 8, 16, 16
    reduction1, reduction2, K, stride = 2, 4, 5, 2
    mid1, mid2 = C // reduction1, C // reduction2

    ks = jax.random.split(key, 9)
    x = jax.random.normal(ks[0], (N, C, T, V), jnp.float32)
    w1 = 0.1 * jax.random.normal(ks[1], (mid1, C, K, 1), jnp.float32)
    b1 = 0.1 * jax.random.normal(ks[2], (mid1,), jnp.float32)
    w2 = 0.1 * jax.random.normal(ks[3], (mid2, mid1, K, 1), jnp.float32)
    b2 = 0.1 * jax.random.normal(ks[4], (mid2,), jnp.float32)
    w3 = 0.1 * jax.random.normal(ks[5], (mid2, C, K, 1), jnp.float32)
    b3 = 0.1 * jax.random.normal(ks[6], (mid2,), jnp.float32)
    w4 = 0.1 * jax.random.normal(ks[7], (C, mid2, 1, 1), jnp.float32)
    b4 = 0.1 * jax.random.normal(ks[8], (C,), jnp.float32)
    params = (w1, b1, w2, b2, w3, b3, w4, b4)

    out = jca_pallas(x, params, kernel_size=K, stride=stride)
    out = jax.block_until_ready(out)

    ref = jca_ref(x, params, kernel_size=K, stride=stride)
    max_err = float(jnp.max(jnp.abs(out - ref)))
    # bf16 MXU inputs with f32 accumulation -> slightly relaxed tolerance.
    assert jnp.allclose(out, ref, atol=5e-3, rtol=5e-3), f"max abs err = {max_err}"
    print("KERNEL_OK")
</pallas_src>

<mosaic_0001>
module attributes {stable_mosaic.version = 11 : i64} {
  func.func @_jca_kernel(%arg0: i32, %arg1: memref<1x40x256xbf16, #tpu.memory_space<vmem>>, %arg2: memref<1x2x8x256xf32, #tpu.memory_space<vmem>>, %arg3: memref<8x40xbf16, #tpu.memory_space<vmem>>, %arg4: memref<256x48xbf16, #tpu.memory_space<vmem>>, %arg5: memref<2x40xbf16, #tpu.memory_space<vmem>>, %arg6: memref<8x2xf32, #tpu.memory_space<vmem>>, %arg7: memref<24x1xf32, #tpu.memory_space<vmem>>, %arg8: memref<1x2x8x256xf32, #tpu.memory_space<vmem>>) attributes {dimension_semantics = [#tpu.dimension_semantics<parallel>], iteration_bounds = array<i64: 1>, scalar_prefetch = 0 : i64, scratch_operands = 0 : i64, tpu.core_type = #tpu.core_type<tc>, window_params = [{transform_indices = @transform_0, window_bounds = array<i64: 1, 40, 256>}, {transform_indices = @transform_1, window_bounds = array<i64: 1, 2, 8, 256>}, {pipeline_mode = #tpu.pipeline_mode<synchronous>, transform_indices = @transform_2, window_bounds = array<i64: 8, 40>}, {pipeline_mode = #tpu.pipeline_mode<synchronous>, transform_indices = @transform_3, window_bounds = array<i64: 256, 48>}, {pipeline_mode = #tpu.pipeline_mode<synchronous>, transform_indices = @transform_4, window_bounds = array<i64: 2, 40>}, {pipeline_mode = #tpu.pipeline_mode<synchronous>, transform_indices = @transform_5, window_bounds = array<i64: 8, 2>}, {pipeline_mode = #tpu.pipeline_mode<synchronous>, transform_indices = @transform_6, window_bounds = array<i64: 24, 1>}, {transform_indices = @transform_7, window_bounds = array<i64: 1, 2, 8, 256>}]} {
    %c0 = arith.constant 0 : index
    %c0_0 = arith.constant 0 : index
    %0 = vector.load %arg7[%c0, %c0_0] : memref<24x1xf32, #tpu.memory_space<vmem>>, vector<8x1xf32>
    %c8 = arith.constant 8 : index
    %c0_1 = arith.constant 0 : index
    %1 = vector.load %arg7[%c8, %c0_1] : memref<24x1xf32, #tpu.memory_space<vmem>>, vector<2x1xf32>
    %c16 = arith.constant 16 : index
    %c0_2 = arith.constant 0 : index
    %2 = vector.load %arg7[%c16, %c0_2] : memref<24x1xf32, #tpu.memory_space<vmem>>, vector<8x1xf32>
    %c0_3 = arith.constant 0 : index
    %c0_4 = arith.constant 0 : index
    %c0_5 = arith.constant 0 : index
    %3 = vector.load %arg1[%c0_3, %c0_4, %c0_5] : memref<1x40x256xbf16, #tpu.memory_space<vmem>>, vector<1x40x256xbf16>
    %4 = vector.shape_cast %3 : vector<1x40x256xbf16> to vector<40x256xbf16>
    %c0_6 = arith.constant 0 : index
    %c0_7 = arith.constant 0 : index
    %5 = vector.load %arg3[%c0_6, %c0_7] : memref<8x40xbf16, #tpu.memory_space<vmem>>, vector<8x40xbf16>
    %cst = arith.constant dense<0.000000e+00> : vector<8x256xf32>
    %6 = tpu.matmul %5, %4, %cst {dimension_numbers = #tpu.dot_dimension_numbers<[1], [0], [0], [1], [0, 0, 1, 1], [], []>} : vector<8x40xbf16>, vector<40x256xbf16>, vector<8x256xf32> -> vector<8x256xf32>
    %7 = vector.broadcast %0 : vector<8x1xf32> to vector<8x256xf32>
    %8 = arith.addf %6, %7 : vector<8x256xf32>
    %cst_8 = arith.constant 0.000000e+00 : f32
    %9 = vector.broadcast %cst_8 : f32 to vector<8x256xf32>
    %10 = arith.maximumf %8, %9 : vector<8x256xf32>
    %11 = arith.truncf %10 : vector<8x256xf32> to vector<8x256xbf16>
    %c0_9 = arith.constant 0 : index
    %c0_10 = arith.constant 0 : index
    %12 = vector.load %arg4[%c0_9, %c0_10] : memref<256x48xbf16, #tpu.memory_space<vmem>>, vector<256x48xbf16>
    %cst_11 = arith.constant dense<0.000000e+00> : vector<8x48xf32>
    %13 = tpu.matmul %11, %12, %cst_11 {dimension_numbers = #tpu.dot_dimension_numbers<[1], [0], [0], [1], [0, 0, 1, 1], [], []>} : vector<8x256xbf16>, vector<256x48xbf16>, vector<8x48xf32> -> vector<8x48xf32>
    %14 = vector.extract_strided_slice %13 {offsets = [4, 16], sizes = [2, 32], strides = [1, 1]} : vector<8x48xf32> to vector<2x32xf32>
    %15 = vector.extract_strided_slice %13 {offsets = [0, 0], sizes = [8, 16], strides = [1, 1]} : vector<8x48xf32> to vector<8x16xf32>
    %cst_12 = arith.constant 0.000000e+00 : f32
    %16 = vector.broadcast %cst_12 : f32 to vector<8x2xf32>
    %17 = vector.extract_strided_slice %15 {offsets = [0, 0], sizes = [8, 8], strides = [1, 1]} : vector<8x16xf32> to vector<8x8xf32>
    %18 = vector.extract_strided_slice %15 {offsets = [0, 8], sizes = [8, 8], strides = [1, 1]} : vector<8x16xf32> to vector<8x8xf32>
    %19 = tpu.concatenate %16, %17, %16, %16, %18, %16 in 1 : vector<8x2xf32>, vector<8x8xf32>, vector<8x2xf32>, vector<8x2xf32>, vector<8x8xf32>, vector<8x2xf32> -> vector<8x24xf32>
    %20 = vector.extract_strided_slice %19 {offsets = [0, 0], sizes = [8, 8], strides = [1, 1]} : vector<8x24xf32> to vector<8x8xf32>
    %21 = vector.extract_strided_slice %19 {offsets = [0, 12], sizes = [8, 8], strides = [1, 1]} : vector<8x24xf32> to vector<8x8xf32>
    %22 = tpu.concatenate %20, %21 in 1 : vector<8x8xf32>, vector<8x8xf32> -> vector<8x16xf32>
    %23 = vector.extract_strided_slice %19 {offsets = [0, 1], sizes = [8, 8], strides = [1, 1]} : vector<8x24xf32> to vector<8x8xf32>
    %24 = vector.extract_strided_slice %19 {offsets = [0, 13], sizes = [8, 8], strides = [1, 1]} : vector<8x24xf32> to vector<8x8xf32>
    %25 = tpu.concatenate %23, %24 in 1 : vector<8x8xf32>, vector<8x8xf32> -> vector<8x16xf32>
    %26 = vector.extract_strided_slice %19 {offsets = [0, 2], sizes = [8, 8], strides = [1, 1]} : vector<8x24xf32> to vector<8x8xf32>
    %27 = vector.extract_strided_slice %19 {offsets = [0, 14], sizes = [8, 8], strides = [1, 1]} : vector<8x24xf32> to vector<8x8xf32>
    %28 = tpu.concatenate %26, %27 in 1 : vector<8x8xf32>, vector<8x8xf32> -> vector<8x16xf32>
    %29 = vector.extract_strided_slice %19 {offsets = [0, 3], sizes = [8, 8], strides = [1, 1]} : vector<8x24xf32> to vector<8x8xf32>
    %30 = vector.extract_strided_slice %19 {offsets = [0, 15], sizes = [8, 8], strides = [1, 1]} : vector<8x24xf32> to vector<8x8xf32>
    %31 = tpu.concatenate %29, %30 in 1 : vector<8x8xf32>, vector<8x8xf32> -> vector<8x16xf32>
    %32 = vector.extract_strided_slice %19 {offsets = [0, 4], sizes = [8, 8], strides = [1, 1]} : vector<8x24xf32> to vector<8x8xf32>
    %33 = vector.extract_strided_slice %19 {offsets = [0, 16], sizes = [8, 8], strides = [1, 1]} : vector<8x24xf32> to vector<8x8xf32>
    %34 = tpu.concatenate %32, %33 in 1 : vector<8x8xf32>, vector<8x8xf32> -> vector<8x16xf32>
    %35 = tpu.concatenate %22, %25, %28, %31, %34 in 0 : vector<8x16xf32>, vector<8x16xf32>, vector<8x16xf32>, vector<8x16xf32>, vector<8x16xf32> -> vector<40x16xf32>
    %c0_13 = arith.constant 0 : index
    %c0_14 = arith.constant 0 : index
    %36 = vector.load %arg5[%c0_13, %c0_14] : memref<2x40xbf16, #tpu.memory_space<vmem>>, vector<2x40xbf16>
    %37 = arith.truncf %35 : vector<40x16xf32> to vector<40x16xbf16>
    %cst_15 = arith.constant dense<0.000000e+00> : vector<2x16xf32>
    %38 = tpu.matmul %36, %37, %cst_15 {dimension_numbers = #tpu.dot_dimension_numbers<[1], [0], [0], [1], [0, 0, 1, 1], [], []>} : vector<2x40xbf16>, vector<40x16xbf16>, vector<2x16xf32> -> vector<2x16xf32>
    %39 = vector.broadcast %1 : vector<2x1xf32> to vector<2x16xf32>
    %40 = arith.addf %38, %39 : vector<2x16xf32>
    %cst_16 = arith.constant 0.000000e+00 : f32
    %41 = vector.broadcast %cst_16 : f32 to vector<2x16xf32>
    %42 = arith.maximumf %40, %41 : vector<2x16xf32>
    %43 = vector.extract_strided_slice %42 {offsets = [0, 0], sizes = [2, 8], strides = [1, 1]} : vector<2x16xf32> to vector<2x8xf32>
    %cst_17 = arith.constant dense<0.000000e+00> : vector<2xf32>
    %44 = vector.multi_reduction <add>, %43, %cst_17 [1] : vector<2x8xf32> to vector<2xf32>
    %45 = vector.shape_cast %44 : vector<2xf32> to vector<2x1xf32>
    %cst_18 = arith.constant 8.000000e+00 : f32
    %46 = vector.broadcast %cst_18 : f32 to vector<2x1xf32>
    %47 = arith.divf %45, %46 : vector<2x1xf32>
    %48 = vector.extract_strided_slice %14 {offsets = [0, 0], sizes = [2, 16], strides = [1, 1]} : vector<2x32xf32> to vector<2x16xf32>
    %49 = vector.broadcast %47 : vector<2x1xf32> to vector<2x16xf32>
    %50 = arith.addf %49, %48 : vector<2x16xf32>
    %c0_19 = arith.constant 0 : index
    %c0_20 = arith.constant 0 : index
    %51 = vector.load %arg6[%c0_19, %c0_20] : memref<8x2xf32, #tpu.memory_space<vmem>>, vector<8x2xf32>
    %cst_21 = arith.constant dense<0.000000e+00> : vector<8x16xf32>
    %52 = tpu.matmul %51, %50, %cst_21 {dimension_numbers = #tpu.dot_dimension_numbers<[1], [0], [0], [1], [0, 0, 1, 1], [], []>} : vector<8x2xf32>, vector<2x16xf32>, vector<8x16xf32> -> vector<8x16xf32>
    %53 = vector.broadcast %2 : vector<8x1xf32> to vector<8x16xf32>
    %54 = arith.addf %52, %53 : vector<8x16xf32>
    %55 = arith.negf %54 : vector<8x16xf32>
    %56 = math.exp %55 : vector<8x16xf32>
    %cst_22 = arith.constant 1.000000e+00 : f32
    %57 = vector.broadcast %cst_22 : f32 to vector<8x16xf32>
    %58 = arith.addf %57, %56 : vector<8x16xf32>
    %59 = arith.divf %57, %58 : vector<8x16xf32>
    %c0_23 = arith.constant 0 : index
    %c0_24 = arith.constant 0 : index
    %c0_25 = arith.constant 0 : index
    %c0_26 = arith.constant 0 : index
    %60 = vector.load %arg2[%c0_23, %c0_24, %c0_25, %c0_26] : memref<1x2x8x256xf32, #tpu.memory_space<vmem>>, vector<1x1x8x256xf32>
    %61 = vector.shape_cast %60 : vector<1x1x8x256xf32> to vector<8x256xf32>
    %62 = tpu.concatenate %59, %59, %59, %59, %59, %59, %59, %59, %59, %59, %59, %59, %59, %59, %59, %59 in 1 : vector<8x16xf32>, vector<8x16xf32>, vector<8x16xf32>, vector<8x16xf32>, vector<8x16xf32>, vector<8x16xf32>, vector<8x16xf32>, vector<8x16xf32>, vector<8x16xf32>, vector<8x16xf32>, vector<8x16xf32>, vector<8x16xf32>, vector<8x16xf32>, vector<8x16xf32>, vector<8x16xf32>, vector<8x16xf32> -> vector<8x256xf32>
    %63 = arith.mulf %61, %62 : vector<8x256xf32>
    %c0_27 = arith.constant 0 : index
    %c0_28 = arith.constant 0 : index
    %c0_29 = arith.constant 0 : index
    %c0_30 = arith.constant 0 : index
    %64 = vector.load %arg8[%c0_27, %c0_28, %c0_29, %c0_30] : memref<1x2x8x256xf32, #tpu.memory_space<vmem>>, vector<1x1x8x256xf32>
    %65 = vector.shape_cast %64 : vector<1x1x8x256xf32> to vector<8x256xf32>
    %66 = vector.shape_cast %63 : vector<8x256xf32> to vector<1x1x8x256xf32>
    tpu.vector_store %arg8[%c0_27, %c0_28, %c0_29, %c0_30], %66 {strides = array<i32>} : memref<1x2x8x256xf32, #tpu.memory_space<vmem>>, vector<1x1x8x256xf32>,
    %67 = vector.extract_strided_slice %42 {offsets = [0, 8], sizes = [2, 8], strides = [1, 1]} : vector<2x16xf32> to vector<2x8xf32>
    %cst_31 = arith.constant dense<0.000000e+00> : vector<2xf32>
    %68 = vector.multi_reduction <add>, %67, %cst_31 [1] : vector<2x8xf32> to vector<2xf32>
    %69 = vector.shape_cast %68 : vector<2xf32> to vector<2x1xf32>
    %cst_32 = arith.constant 8.000000e+00 : f32
    %70 = vector.broadcast %cst_32 : f32 to vector<2x1xf32>
    %71 = arith.divf %69, %70 : vector<2x1xf32>
    %72 = vector.extract_strided_slice %14 {offsets = [0, 16], sizes = [2, 16], strides = [1, 1]} : vector<2x32xf32> to vector<2x16xf32>
    %73 = vector.broadcast %71 : vector<2x1xf32> to vector<2x16xf32>
    %74 = arith.addf %73, %72 : vector<2x16xf32>
    %c0_33 = arith.constant 0 : index
    %c0_34 = arith.constant 0 : index
    %75 = vector.load %arg6[%c0_33, %c0_34] : memref<8x2xf32, #tpu.memory_space<vmem>>, vector<8x2xf32>
    %cst_35 = arith.constant dense<0.000000e+00> : vector<8x16xf32>
    %76 = tpu.matmul %75, %74, %cst_35 {dimension_numbers = #tpu.dot_dimension_numbers<[1], [0], [0], [1], [0, 0, 1, 1], [], []>} : vector<8x2xf32>, vector<2x16xf32>, vector<8x16xf32> -> vector<8x16xf32>
    %77 = vector.broadcast %2 : vector<8x1xf32> to vector<8x16xf32>
    %78 = arith.addf %76, %77 : vector<8x16xf32>
    %79 = arith.negf %78 : vector<8x16xf32>
    %80 = math.exp %79 : vector<8x16xf32>
    %cst_36 = arith.constant 1.000000e+00 : f32
    %81 = vector.broadcast %cst_36 : f32 to vector<8x16xf32>
    %82 = arith.addf %81, %80 : vector<8x16xf32>
    %83 = arith.divf %81, %82 : vector<8x16xf32>
    %c0_37 = arith.constant 0 : index
    %c1 = arith.constant 1 : index
    %c0_38 = arith.constant 0 : index
    %c0_39 = arith.constant 0 : index
    %84 = vector.load %arg2[%c0_37, %c1, %c0_38, %c0_39] : memref<1x2x8x256xf32, #tpu.memory_space<vmem>>, vector<1x1x8x256xf32>
    %85 = vector.shape_cast %84 : vector<1x1x8x256xf32> to vector<8x256xf32>
    %86 = tpu.concatenate %83, %83, %83, %83, %83, %83, %83, %83, %83, %83, %83, %83, %83, %83, %83, %83 in 1 : vector<8x16xf32>, vector<8x16xf32>, vector<8x16xf32>, vector<8x16xf32>, vector<8x16xf32>, vector<8x16xf32>, vector<8x16xf32>, vector<8x16xf32>, vector<8x16xf32>, vector<8x16xf32>, vector<8x16xf32>, vector<8x16xf32>, vector<8x16xf32>, vector<8x16xf32>, vector<8x16xf32>, vector<8x16xf32> -> vector<8x256xf32>
    %87 = arith.mulf %85, %86 : vector<8x256xf32>
    %c0_40 = arith.constant 0 : index
    %c1_41 = arith.constant 1 : index
    %c0_42 = arith.constant 0 : index
    %c0_43 = arith.constant 0 : index
    %88 = vector.load %arg8[%c0_40, %c1_41, %c0_42, %c0_43] : memref<1x2x8x256xf32, #tpu.memory_space<vmem>>, vector<1x1x8x256xf32>
    %89 = vector.shape_cast %88 : vector<1x1x8x256xf32> to vector<8x256xf32>
    %90 = vector.shape_cast %87 : vector<8x256xf32> to vector<1x1x8x256xf32>
    tpu.vector_store %arg8[%c0_40, %c1_41, %c0_42, %c0_43], %90 {strides = array<i32>} : memref<1x2x8x256xf32, #tpu.memory_space<vmem>>, vector<1x1x8x256xf32>,
    return
  }
  func.func @transform_0(%arg0: i32) -> (i32, i32, i32) {
    %c0_i32 = arith.constant 0 : i32
    %c0_i32_0 = arith.constant 0 : i32
    %c0_i32_1 = arith.constant 0 : i32
    return %arg0, %c0_i32, %c0_i32_0 : i32, i32, i32
  }
  func.func @transform_1(%arg0: i32) -> (i32, i32, i32, i32) {
    %c0_i32 = arith.constant 0 : i32
    %c0_i32_0 = arith.constant 0 : i32
    %c0_i32_1 = arith.constant 0 : i32
    %c0_i32_2 = arith.constant 0 : i32
    return %arg0, %c0_i32, %c0_i32_0, %c0_i32_1 : i32, i32, i32, i32
  }
  func.func @transform_2(%arg0: i32) -> (i32, i32) {
    %c0_i32 = arith.constant 0 : i32
    %c0_i32_0 = arith.constant 0 : i32
    %c0_i32_1 = arith.constant 0 : i32
    return %c0_i32, %c0_i32_0 : i32, i32
  }
  func.func @transform_3(%arg0: i32) -> (i32, i32) {
    %c0_i32 = arith.constant 0 : i32
    %c0_i32_0 = arith.constant 0 : i32
    %c0_i32_1 = arith.constant 0 : i32
    return %c0_i32, %c0_i32_0 : i32, i32
  }
  func.func @transform_4(%arg0: i32) -> (i32, i32) {
    %c0_i32 = arith.constant 0 : i32
    %c0_i32_0 = arith.constant 0 : i32
    %c0_i32_1 = arith.constant 0 : i32
    return %c0_i32, %c0_i32_0 : i32, i32
  }
  func.func @transform_5(%arg0: i32) -> (i32, i32) {
    %c0_i32 = arith.constant 0 : i32
    %c0_i32_0 = arith.constant 0 : i32
    %c0_i32_1 = arith.constant 0 : i32
    return %c0_i32, %c0_i32_0 : i32, i32
  }
  func.func @transform_6(%arg0: i32) -> (i32, i32) {
    %c0_i32 = arith.constant 0 : i32
    %c0_i32_0 = arith.constant 0 : i32
    %c0_i32_1 = arith.constant 0 : i32
    return %c0_i32, %c0_i32_0 : i32, i32
  }
  func.func @transform_7(%arg0: i32) -> (i32, i32, i32, i32) {
    %c0_i32 = arith.constant 0 : i32
    %c0_i32_0 = arith.constant 0 : i32
    %c0_i32_1 = arith.constant 0 : i32
    %c0_i32_2 = arith.constant 0 : i32
    return %arg0, %c0_i32, %c0_i32_0, %c0_i32_1 : i32, i32, i32, i32
  }
}

</mosaic_0001>

<llo_original>
// kernel: tpu_custom_call.1
$region0: #{tpu_custom_call.1}
  #allocation0 [shape = 'u32[]', space=smem, size = 0x4, offset = 0x4, fixed_abs, tag = 'smem constant byte address 0x4 - core index']
  #allocation1 [shape = 'u32[144,128]{1,0:T(1,128)}', space=vmem, size = 0x12000, scoped, tag = 'internal scratch']
  %s0 = inlined_call_operand.vmem [shape: bf16[1,40,256], index: 0, kind: input, shape index: {}]
  %s1 = inlined_call_operand.vmem [shape: f32[1,2,8,256], index: 1, kind: input, shape index: {}]
  %s2 = inlined_call_operand.vmem [shape: bf16[8,40], index: 2, kind: input, shape index: {}]
  %s3 = inlined_call_operand.vmem [shape: bf16[256,48], index: 3, kind: input, shape index: {}]
  %s4 = inlined_call_operand.vmem [shape: bf16[2,40], index: 4, kind: input, shape index: {}]
  %s5 = inlined_call_operand.vmem [shape: f32[8,2], index: 5, kind: input, shape index: {}]
  %s6 = inlined_call_operand.vmem [shape: f32[24,1], index: 6, kind: input, shape index: {}]
  %s7 = inlined_call_operand.hbm [shape: f32[1,2,8,256], index: 7, kind: output, shape index: {}]
  %s8 = sld [smem:[#allocation0]]
  $region38: #{tpu_custom_call.1} parent=0
    _
  %s10 = ssub.s32 1, %s8
  %s11 = scalar_select 0, %s10, %s8
  $region1: #{tpu_custom_call.1} parent=0
    #allocation2 [shape = 'u8[16384]{0}', space=vmem, size = 0x4000, scoped, tag = 'output window, operand 0, single buffered']
    #allocation3 [shape = 's32[1]{0}', space=sflag, size = 0x4, scoped, tag = 'scoped memory for tpu_custom_call.1']
    %12 = vsyncpa [#allocation3], 0
    // Predicated region
    $region2: #{tpu_custom_call.1} parent=1 // pred_check
      _
    $region3: #{tpu_custom_call.1} parent=1 // pred_check_branch
      %14 = sbr.rel (0) target = $region5
    $region4: #{tpu_custom_call.1} parent=1 // pred_region
      _
    $region5: #{tpu_custom_call.1} parent=1 // pred_fallthru
      _
    // Predicated region
    $region6: #{tpu_custom_call.1} parent=1 // pred_check
      _
    $region7: #{tpu_custom_call.1} parent=1 // pred_check_branch
      %16 = sbr.rel (0) target = $region9
    $region8: #{tpu_custom_call.1} parent=1 // pred_region
      _
    $region9: #{tpu_custom_call.1} parent=1 // pred_fallthru
      _
    // Predicated region
    $region10: #{tpu_custom_call.1} parent=1 // pred_check
      _
    $region11: #{tpu_custom_call.1} parent=1 // pred_check_branch
      %18 = sbr.rel (0) target = $region13
    $region12: #{tpu_custom_call.1} parent=1 // pred_region
      _
    $region13: #{tpu_custom_call.1} parent=1 // pred_fallthru
      _
    // Predicated region
    $region14: #{tpu_custom_call.1} parent=1 // pred_check
      _
    $region15: #{tpu_custom_call.1} parent=1 // pred_check_branch
      %20 = sbr.rel (0) target = $region17
    $region16: #{tpu_custom_call.1} parent=1 // pred_region
      _
    $region17: #{tpu_custom_call.1} parent=1 // pred_fallthru
      _
    // Predicated region
    $region18: #{tpu_custom_call.1} parent=1 // pred_check
      _
    $region19: #{tpu_custom_call.1} parent=1 // pred_check_branch
      %22 = sbr.rel (0) target = $region21
    $region20: #{tpu_custom_call.1} parent=1 // pred_region
      _
    $region21: #{tpu_custom_call.1} parent=1 // pred_fallthru
      _
    // Predicated region
    $region22: #{tpu_custom_call.1} parent=1 // pred_check
      _
    $region23: #{tpu_custom_call.1} parent=1 // pred_check_branch
      %24 = sbr.rel (0) target = $region25
    $region24: #{tpu_custom_call.1} parent=1 // pred_region
      _
    $region25: #{tpu_custom_call.1} parent=1 // pred_fallthru
      _
    // Predicated region
    $region26: #{tpu_custom_call.1} parent=1 // pred_check
      _
    $region27: #{tpu_custom_call.1} parent=1 // pred_check_branch
      %26 = sbr.rel (0) target = $region29
    $region28: #{tpu_custom_call.1} parent=1 // pred_region
      _
    $region29: #{tpu_custom_call.1} parent=1 // pred_fallthru
      _
    %v28 = vld [vmem:[%s6] sm:$0xff]
    %v29 = vld [vmem:[%s6 + $0x8] sm:$0x3]
    %v30 = vld [vmem:[%s6 + $0x10] sm:$0xff]
    %v31 = vld [vmem:[%s0] sm:$0xff]
    %v32 = vld [vmem:[%s0 + $0x8] sm:$0xff]
    %v33 = vld [vmem:[%s0 + $0x10] sm:$0xff]
    %v34 = vld [vmem:[%s0 + $0x18] sm:$0xff]
    %v35 = vld [vmem:[%s0 + $0x20] sm:$0xff]
    %v36 = vld [vmem:[%s2] sm:$0xf]
    %38 = vset.pattern.permute.xlu0 0
    %39 = vperm.xlu0 %38, %v28
    %v40 = vpop.permute.xlu0 %39
    %v47 = vunpack.c.l.b16 %v31
    %v48 = vunpack.c.h.b16 %v31
    %v49 = vunpack.c.l.b16 %v32
    %v50 = vunpack.c.h.b16 %v32
    %v51 = vunpack.c.l.b16 %v33
    %v52 = vunpack.c.h.b16 %v33
    %v53 = vunpack.c.l.b16 %v34
    %v54 = vunpack.c.h.b16 %v34
    %v55 = vunpack.c.l.b16 %v35
    %v56 = vunpack.c.h.b16 %v35
    %v57 = vpack.c.b16 %v49, %v47
    %v58 = vpack.c.b16 %v50, %v48
    %v59 = vpack.c.b16 %v53, %v51
    %v60 = vpack.c.b16 %v54, %v52
    %v61 = vpack.c.b16 %v55, %v55
    %v62 = vpack.c.b16 %v56, %v56
    %vm67 = vcmask 326656
    %v69 = vsel %vm67, %v36, 0
    %vm71 = vcmask 1043456
    %v73 = vsel %vm71, %v61, 0
    %v76 = vsel %vm71, %v62, 0
    %78 = vmatprep.subr.bf16.mxu0 0
    %79 = vmatpush1.bf16.msra.mxu0 0
    %80 = vmatprep.subr.bf16.mxu0 0
    %81 = vmatpush1.bf16.msra.mxu0 0
    %82 = vmatprep.subr.bf16.mxu0 0
    %83 = vmatpush1.bf16.msra.mxu0 0
    %84 = vmatprep.subr.bf16.mxu0 0
    %85 = vmatpush1.bf16.msra.mxu0 0
    %86 = vmatprep.subr.bf16.mxu0 0
    %87 = vmatpush1.bf16.msra.mxu0 0
    %88 = vmatprep.subr.bf16.mxu0 %v76
    %89 = vmatpush1.bf16.msra.mxu0 %v73
    %90 = vmatprep.subr.bf16.mxu0 %v60
    %91 = vmatpush1.bf16.msra.mxu0 %v59
    %92 = vmatprep.subr.bf16.mxu0 %v58
    %93 = vmatpush1.bf16.msra.mxu0 %v57
    %94 = vmatprep.subr.bf16.mxu0 0
    %95 = vmatpush2.bf16.msra.mxu0 0
    %96 = vmatprep.subr.bf16.mxu0 0
    %97 = vmatpush2.bf16.msra.mxu0 0
    %98 = vmatprep.subr.bf16.mxu0 0
    %99 = vmatpush2.bf16.msra.mxu0 0
    %100 = vmatprep.subr.bf16.mxu0 0
    %101 = vmatpush2.bf16.msra.mxu0 0
    %102 = vmatprep.subr.bf16.mxu0 0
    %103 = vmatpush2.bf16.msra.mxu0 0
    %104 = vmatprep.subr.bf16.mxu0 0
    %105 = vmatpush2.bf16.msra.mxu0 0
    %106 = vmatprep.subr.bf16.mxu0 0
    %107 = vmatpush2.bf16.msra.mxu0 0
    %108 = vmatprep.subr.bf16.mxu0 0
    %109 = vmatpush2.bf16.msra.mxu0 0
    %110 = vmatprep.mubr.bf16.mxu0 0
    %111 = vmatmul.mubr.bf16.gmra.mxu0 %v69
    %v112 = vpop.f32.mrf.mxu0
    %v113 = vadd.f32 %v40, %v112
    %v114 = vpop.f32.mrf.mxu0
    %v115 = vadd.f32 %v40, %v114
    %v116 = vpop.f32.mrf.mxu0
    %v117 = vpop.f32.mrf.mxu0
    %118 = vdwg.mxu0
    %v119 = vmax.f32 %v113, 0.0
    %v120 = vmax.f32 %v115, 0.0
    %v121 = vpack.c.bf16 %v119, %v119
    %v122 = vpack.c.bf16 %v120, %v120
    %v123 = vld [vmem:[%s3] sm:$0xf]
    %v124 = vld [vmem:[%s3 + $0x4] sm:$0xf]
    %v125 = vld [vmem:[%s3 + $0x8] sm:$0xf]
    %v126 = vld [vmem:[%s3 + $0xc] sm:$0xf]
    %v127 = vld [vmem:[%s3 + $0x10] sm:$0xf]
    %v128 = vld [vmem:[%s3 + $0x14] sm:$0xf]
    %v129 = vld [vmem:[%s3 + $0x18] sm:$0xf]
    %v130 = vld [vmem:[%s3 + $0x1c] sm:$0xf]
    %v131 = vld [vmem:[%s3 + $0x20] sm:$0xf]
    %v132 = vld [vmem:[%s3 + $0x24] sm:$0xf]
    %v133 = vld [vmem:[%s3 + $0x28] sm:$0xf]
    %v134 = vld [vmem:[%s3 + $0x2c] sm:$0xf]
    %v135 = vld [vmem:[%s3 + $0x30] sm:$0xf]
    %v136 = vld [vmem:[%s3 + $0x34] sm:$0xf]
    %v137 = vld [vmem:[%s3 + $0x38] sm:$0xf]
    %v138 = vld [vmem:[%s3 + $0x3c] sm:$0xf]
    %v139 = vld [vmem:[%s3 + $0x40] sm:$0xf]
    %v140 = vld [vmem:[%s3 + $0x44] sm:$0xf]
    %v141 = vld [vmem:[%s3 + $0x48] sm:$0xf]
    %v142 = vld [vmem:[%s3 + $0x4c] sm:$0xf]
    %v143 = vld [vmem:[%s3 + $0x50] sm:$0xf]
    %v144 = vld [vmem:[%s3 + $0x54] sm:$0xf]
    %v145 = vld [vmem:[%s3 + $0x58] sm:$0xf]
    %v146 = vld [vmem:[%s3 + $0x5c] sm:$0xf]
    %v147 = vld [vmem:[%s3 + $0x60] sm:$0xf]
    %v148 = vld [vmem:[%s3 + $0x64] sm:$0xf]
    %v149 = vld [vmem:[%s3 + $0x68] sm:$0xf]
    %v150 = vld [vmem:[%s3 + $0x6c] sm:$0xf]
    %v151 = vld [vmem:[%s3 + $0x70] sm:$0xf]
    %v152 = vld [vmem:[%s3 + $0x74] sm:$0xf]
    %v153 = vld [vmem:[%s3 + $0x78] sm:$0xf]
    %v154 = vld [vmem:[%s3 + $0x7c] sm:$0xf]
    %v187 = vunpack.c.l.b16 %v123
    %v188 = vunpack.c.l.b16 %v124
    %v189 = vunpack.c.l.b16 %v125
    %v190 = vunpack.c.l.b16 %v126
    %v191 = vunpack.c.l.b16 %v127
    %v192 = vunpack.c.l.b16 %v128
    %v193 = vunpack.c.l.b16 %v129
    %v194 = vunpack.c.l.b16 %v130
    %v195 = vunpack.c.l.b16 %v131
    %v196 = vunpack.c.l.b16 %v132
    %v197 = vunpack.c.l.b16 %v133
    %v198 = vunpack.c.l.b16 %v134
    %v199 = vunpack.c.l.b16 %v135
    %v200 = vunpack.c.l.b16 %v136
    %v201 = vunpack.c.l.b16 %v137
    %v202 = vunpack.c.l.b16 %v138
    %v203 = vunpack.c.l.b16 %v139
    %v204 = vunpack.c.l.b16 %v140
    %v205 = vunpack.c.l.b16 %v141
    %v206 = vunpack.c.l.b16 %v142
    %v207 = vunpack.c.l.b16 %v143
    %v208 = vunpack.c.l.b16 %v144
    %v209 = vunpack.c.l.b16 %v145
    %v210 = vunpack.c.l.b16 %v146
    %v211 = vunpack.c.l.b16 %v147
    %v212 = vunpack.c.l.b16 %v148
    %v213 = vunpack.c.l.b16 %v149
    %v214 = vunpack.c.l.b16 %v150
    %v215 = vunpack.c.l.b16 %v151
    %v216 = vunpack.c.l.b16 %v152
    %v217 = vunpack.c.l.b16 %v153
    %v218 = vunpack.c.l.b16 %v154
    %v219 = vpack.c.b16 %v188, %v187
    %v220 = vpack.c.b16 %v190, %v189
    %v221 = vpack.c.b16 %v192, %v191
    %v222 = vpack.c.b16 %v194, %v193
    %v223 = vpack.c.b16 %v196, %v195
    %v224 = vpack.c.b16 %v198, %v197
    %v225 = vpack.c.b16 %v200, %v199
    %v226 = vpack.c.b16 %v202, %v201
    %v227 = vpack.c.b16 %v204, %v203
    %v228 = vpack.c.b16 %v206, %v205
    %v229 = vpack.c.b16 %v208, %v207
    %v230 = vpack.c.b16 %v210, %v209
    %v231 = vpack.c.b16 %v212, %v211
    %v232 = vpack.c.b16 %v214, %v213
    %v233 = vpack.c.b16 %v216, %v215
    %v234 = vpack.c.b16 %v218, %v217
    %251 = vmatprep.subr.bf16.mxu0 0
    %252 = vmatpush1.bf16.msra.mxu0 %v226
    %253 = vmatprep.subr.bf16.mxu0 0
    %254 = vmatpush1.bf16.msra.mxu0 %v225
    %255 = vmatprep.subr.bf16.mxu0 0
    %256 = vmatpush1.bf16.msra.mxu0 %v224
    %257 = vmatprep.subr.bf16.mxu0 0
    %258 = vmatpush1.bf16.msra.mxu0 %v223
    %259 = vmatprep.subr.bf16.mxu0 0
    %260 = vmatpush1.bf16.msra.mxu0 %v222
    %261 = vmatprep.subr.bf16.mxu0 0
    %262 = vmatpush1.bf16.msra.mxu0 %v221
    %263 = vmatprep.subr.bf16.mxu0 0
    %264 = vmatpush1.bf16.msra.mxu0 %v220
    %265 = vmatprep.subr.bf16.mxu0 0
    %266 = vmatpush1.bf16.msra.mxu0 %v219
    %267 = vmatprep.subr.bf16.mxu0 0
    %268 = vmatpush2.bf16.msra.mxu0 %v234
    %269 = vmatprep.subr.bf16.mxu0 0
    %270 = vmatpush2.bf16.msra.mxu0 %v233
    %271 = vmatprep.subr.bf16.mxu0 0
    %272 = vmatpush2.bf16.msra.mxu0 %v232
    %273 = vmatprep.subr.bf16.mxu0 0
    %274 = vmatpush2.bf16.msra.mxu0 %v231
    %275 = vmatprep.subr.bf16.mxu0 0
    %276 = vmatpush2.bf16.msra.mxu0 %v230
    %277 = vmatprep.subr.bf16.mxu0 0
    %278 = vmatpush2.bf16.msra.mxu0 %v229
    %279 = vmatprep.subr.bf16.mxu0 0
    %280 = vmatpush2.bf16.msra.mxu0 %v228
    %281 = vmatprep.subr.bf16.mxu0 0
    %282 = vmatpush2.bf16.msra.mxu0 %v227
    %283 = vmatprep.mubr.bf16.mxu0 %v122
    %284 = vmatmul.mubr.bf16.gmra.mxu0 %v121
    %v285 = vpop.f32.mrf.mxu0
    %v286 = vadd.f32 0.0, %v285
    %v287 = vpop.f32.mrf.mxu0
    %v288 = vpop.f32.mrf.mxu0
    %v289 = vpop.f32.mrf.mxu0
    %290 = vdwg.mxu0
    %292 = vrot.lane.b32.xlu0 %v286, 2
    %v293 = vpop.permute.xlu0 %292
    %295 = vrot.lane.b32.xlu0 %v286, 6
    %v296 = vpop.permute.xlu0 %295
    %vm298 = vcmask 15360
    %v299 = vsel %vm298, 0.0, %v293
    %vm300 = vcmask 80896
    %v301 = vsel %vm300, %v299, 0.0
    %vm302 = vcmask 97280
    %v303 = vsel %vm302, %v301, 0.0
    %vm304 = vcmask 113664
    %v305 = vsel %vm304, %v303, %v296
    %vm306 = vcmask 179200
    %v307 = vsel %vm306, %v305, 0.0
    %309 = vrot.lane.b32.xlu0 %v307, 124
    %v310 = vpop.permute.xlu0 %309
    %vm312 = vcmask 64512
    %v313 = vsel %vm312, %v307, %v310
    %314 = vrot.lane.b32.xlu0 %v307, 127
    %v315 = vpop.permute.xlu0 %314
    %317 = vrot.lane.b32.xlu0 %v307, 123
    %v318 = vpop.permute.xlu0 %317
    %v320 = vsel %vm312, %v315, %v318
    %321 = vrot.lane.b32.xlu0 %v307, 126
    %v322 = vpop.permute.xlu0 %321
    %324 = vrot.lane.b32.xlu0 %v307, 122
    %v325 = vpop.permute.xlu0 %324
    %v327 = vsel %vm312, %v322, %v325
    %328 = vrot.lane.b32.xlu0 %v307, 125
    %v329 = vpop.permute.xlu0 %328
    %331 = vrot.lane.b32.xlu0 %v307, 121
    %v332 = vpop.permute.xlu0 %331
    %v334 = vsel %vm312, %v329, %v332
    %335 = vrot.lane.b32.xlu0 %v307, 120
    %v336 = vpop.permute.xlu0 %335
    %v338 = vsel %vm312, %v310, %v336
    %v339 = vld [vmem:[%s4] sm:$0x1]
    %v340 = vpack.c.bf16 %v320, %v313
    %v341 = vpack.c.bf16 %v334, %v327
    %v342 = vpack.c.bf16 %v338, %v338
    %344 = vset.pattern.permute.xlu0 0
    %345 = vperm.xlu0 %344, %v29
    %v346 = vpop.permute.xlu0 %345
    %v349 = vsel %vm67, %v339, 0
    %v352 = vsel %vm71, %v342, 0
    %354 = vmatprep.subr.bf16.mxu0 0
    %355 = vmatpush1.bf16.msra.mxu0 0
    %356 = vmatprep.subr.bf16.mxu0 0
    %357 = vmatpush1.bf16.msra.mxu0 0
    %358 = vmatprep.subr.bf16.mxu0 0
    %359 = vmatpush1.bf16.msra.mxu0 0
    %360 = vmatprep.subr.bf16.mxu0 0
    %361 = vmatpush1.bf16.msra.mxu0 0
    %362 = vmatprep.subr.bf16.mxu0 0
    %363 = vmatpush1.bf16.msra.mxu0 0
    %364 = vmatprep.subr.bf16.mxu0 0
    %365 = vmatpush1.bf16.msra.mxu0 %v352
    %366 = vmatprep.subr.bf16.mxu0 0
    %367 = vmatpush1.bf16.msra.mxu0 %v341
    %368 = vmatprep.subr.bf16.mxu0 0
    %369 = vmatpush1.bf16.msra.mxu0 %v340
    %370 = vmatprep.subr.bf16.mxu0 0
    %371 = vmatpush2.bf16.msra.mxu0 0
    %372 = vmatprep.subr.bf16.mxu0 0
    %373 = vmatpush2.bf16.msra.mxu0 0
    %374 = vmatprep.subr.bf16.mxu0 0
    %375 = vmatpush2.bf16.msra.mxu0 0
    %376 = vmatprep.subr.bf16.mxu0 0
    %377 = vmatpush2.bf16.msra.mxu0 0
    %378 = vmatprep.subr.bf16.mxu0 0
    %379 = vmatpush2.bf16.msra.mxu0 0
    %380 = vmatprep.subr.bf16.mxu0 0
    %381 = vmatpush2.bf16.msra.mxu0 0
    %382 = vmatprep.subr.bf16.mxu0 0
    %383 = vmatpush2.bf16.msra.mxu0 0
    %384 = vmatprep.subr.bf16.mxu0 0
    %385 = vmatpush2.bf16.msra.mxu0 0
    %386 = vmatprep.mubr.bf16.mxu0 0
    %387 = vmatmul.mubr.bf16.gmra.mxu0 %v349
    %v388 = vpop.f32.mrf.mxu0
    %v389 = vadd.f32 %v346, %v388
    %v390 = vpop.f32.mrf.mxu0
    %v391 = vpop.f32.mrf.mxu0
    %v392 = vpop.f32.mrf.mxu0
    %393 = vdwg.mxu0
    %v394 = vmax.f32 %v389, 0.0
    %vm395 = vcmask 58368
    %v396 = vsel %vm395, %v394, 0.0
    %397 = vadd.xlane.f32.xlu0 %v396
    %v398 = vpop.xlane.xlu0 %397
    %v399 = vrcp.pop 8.0
    %v400 = vmul.f32 %v398, %v399
    %v401 = vrot.slane %v286, 4
    %402 = vrot.lane.b32.xlu0 %v401, 112
    %v403 = vpop.permute.xlu0 %402
    %v405 = vadd.f32 %v400, %v403
    %v406 = vld [vmem:[%s5] sm:$0xff]
    %408 = vset.pattern.permute.xlu0 0
    %409 = vperm.xlu0 %408, %v30
    %v410 = vpop.permute.xlu0 %409
    %v413 = vsel %vm298, %v406, 0
    %vm415 = vcmask 1041408
    %v417 = vsel %vm415, %v405, 0
    %419 = vmatprep.subr.mxu0 0.0
    %420 = vmatpush1.msra.mxu0 0.0
    %421 = vmatprep.subr.mxu0 0.0
    %422 = vmatpush1.msra.mxu0 0.0
    %423 = vmatprep.subr.mxu0 0.0
    %424 = vmatpush1.msra.mxu0 0.0
    %425 = vmatprep.subr.mxu0 0.0
    %426 = vmatpush1.msra.mxu0 0.0
    %427 = vmatprep.subr.mxu0 0.0
    %428 = vmatpush1.msra.mxu0 0.0
    %429 = vmatprep.subr.mxu0 0.0
    %430 = vmatpush1.msra.mxu0 0.0
    %431 = vmatprep.subr.mxu0 0.0
    %432 = vmatpush1.msra.mxu0 0.0
    %433 = vmatprep.subr.mxu0 0.0
    %434 = vmatpush1.msra.mxu0 0.0
    %435 = vmatprep.subr.mxu0 0.0
    %436 = vmatpush1.msra.mxu0 0.0
    %437 = vmatprep.subr.mxu0 0.0
    %438 = vmatpush1.msra.mxu0 0.0
    %439 = vmatprep.subr.mxu0 0.0
    %440 = vmatpush1.msra.mxu0 0.0
    %441 = vmatprep.subr.mxu0 0.0
    %442 = vmatpush1.msra.mxu0 0.0
    %443 = vmatprep.subr.mxu0 0.0
    %444 = vmatpush1.msra.mxu0 0.0
    %445 = vmatprep.subr.mxu0 0.0
    %446 = vmatpush1.msra.mxu0 0.0
    %447 = vmatprep.subr.mxu0 0.0
    %448 = vmatpush1.msra.mxu0 0.0
    %449 = vmatprep.subr.mxu0 0.0
    %450 = vmatpush1.msra.mxu0 %v417
    %451 = vmatprep.subr.mxu0 0.0
    %452 = vmatpush2.msra.mxu0 0.0
    %453 = vmatprep.subr.mxu0 0.0
    %454 = vmatpush2.msra.mxu0 0.0
    %455 = vmatprep.subr.mxu0 0.0
    %456 = vmatpush2.msra.mxu0 0.0
    %457 = vmatprep.subr.mxu0 0.0
    %458 = vmatpush2.msra.mxu0 0.0
    %459 = vmatprep.subr.mxu0 0.0
    %460 = vmatpush2.msra.mxu0 0.0
    %461 = vmatprep.subr.mxu0 0.0
    %462 = vmatpush2.msra.mxu0 0.0
    %463 = vmatprep.subr.mxu0 0.0
    %464 = vmatpush2.msra.mxu0 0.0
    %465 = vmatprep.subr.mxu0 0.0
    %466 = vmatpush2.msra.mxu0 0.0
    %467 = vmatprep.subr.mxu0 0.0
    %468 = vmatpush2.msra.mxu0 0.0
    %469 = vmatprep.subr.mxu0 0.0
    %470 = vmatpush2.msra.mxu0 0.0
    %471 = vmatprep.subr.mxu0 0.0
    %472 = vmatpush2.msra.mxu0 0.0
    %473 = vmatprep.subr.mxu0 0.0
    %474 = vmatpush2.msra.mxu0 0.0
    %475 = vmatprep.subr.mxu0 0.0
    %476 = vmatpush2.msra.mxu0 0.0
    %477 = vmatprep.subr.mxu0 0.0
    %478 = vmatpush2.msra.mxu0 0.0
    %479 = vmatprep.subr.mxu0 0.0
    %480 = vmatpush2.msra.mxu0 0.0
    %481 = vmatprep.subr.mxu0 0.0
    %482 = vmatpush2.msra.mxu0 0.0
    %483 = vmatprep.mubr.f32.mxu0 0.0
    %484 = vmatmul.mubr.f32.gmra.mxu0 %v413
    %v485 = vpop.f32.mrf.mxu0
    %v486 = vadd.f32 %v410, %v485
    %v487 = vpop.f32.mrf.mxu0
    %488 = vdwg.mxu0
    %v489 = vxor.u32 %v486, 2147483648
    %v490 = vmul.f32 %v489, 1.442695
    %v491 = vpow.pop %v490
    %v492 = vadd.f32 %v491, 1.0
    %v493 = vrcp.pop %v492
    %v494 = vmul.f32 1.0, %v493
    %v495 = vld [vmem:[%s1] sm:$0xff]
    %v496 = vld [vmem:[%s1 + $0x8] sm:$0xff]
    %498 = vrot.lane.b32.xlu0 %v494, 16
    %v499 = vpop.permute.xlu0 %498
    %501 = vrot.lane.b32.xlu0 %v494, 32
    %v502 = vpop.permute.xlu0 %501
    %504 = vrot.lane.b32.xlu0 %v494, 48
    %v505 = vpop.permute.xlu0 %504
    %507 = vrot.lane.b32.xlu0 %v494, 64
    %v508 = vpop.permute.xlu0 %507
    %510 = vrot.lane.b32.xlu0 %v494, 80
    %v511 = vpop.permute.xlu0 %510
    %513 = vrot.lane.b32.xlu0 %v494, 96
    %v514 = vpop.permute.xlu0 %513
    %516 = vrot.lane.b32.xlu0 %v494, 112
    %v517 = vpop.permute.xlu0 %516
    %vm519 = vcmask 130048
    %v520 = vsel %vm519, %v494, %v499
    %vm521 = vcmask 261120
    %v522 = vsel %vm521, %v520, %v502
    %vm523 = vcmask 392192
    %v524 = vsel %vm523, %v522, %v505
    %vm525 = vcmask 523264
    %v526 = vsel %vm525, %v524, %v508
    %vm527 = vcmask 654336
    %v528 = vsel %vm527, %v526, %v511
    %vm529 = vcmask 785408
    %v530 = vsel %vm529, %v528, %v514
    %vm531 = vcmask 916480
    %v532 = vsel %vm531, %v530, %v517
    %v533 = vmul.f32 %v495, %v532
    %v534 = vmul.f32 %v496, %v532
    %535 = vst [vmem:[#allocation2] sm:$0xff] %v533
    %536 = vst [vmem:[#allocation2 + $0x8] sm:$0xff] %v534
    %538 = vrot.lane.b32.xlu0 %v394, 120
    %v539 = vpop.permute.xlu0 %538
    %v541 = vsel %vm395, %v539, 0.0
    %542 = vadd.xlane.f32.xlu0 %v541
    %v543 = vpop.xlane.xlu0 %542
    %v544 = vmul.f32 %v543, %v399
    %545 = vrot.lane.b32.xlu0 %v401, 96
    %v546 = vpop.permute.xlu0 %545
    %v548 = vadd.f32 %v544, %v546
    %v549 = vld [vmem:[%s5] sm:$0xff]
    %v551 = vsel %vm298, %v549, 0
    %v554 = vsel %vm415, %v548, 0
    %556 = vmatprep.subr.mxu0 0.0
    %557 = vmatpush1.msra.mxu0 0.0
    %558 = vmatprep.subr.mxu0 0.0
    %559 = vmatpush1.msra.mxu0 0.0
    %560 = vmatprep.subr.mxu0 0.0
    %561 = vmatpush1.msra.mxu0 0.0
    %562 = vmatprep.subr.mxu0 0.0
    %563 = vmatpush1.msra.mxu0 0.0
    %564 = vmatprep.subr.mxu0 0.0
    %565 = vmatpush1.msra.mxu0 0.0
    %566 = vmatprep.subr.mxu0 0.0
    %567 = vmatpush1.msra.mxu0 0.0
    %568 = vmatprep.subr.mxu0 0.0
    %569 = vmatpush1.msra.mxu0 0.0
    %570 = vmatprep.subr.mxu0 0.0
    %571 = vmatpush1.msra.mxu0 0.0
    %572 = vmatprep.subr.mxu0 0.0
    %573 = vmatpush1.msra.mxu0 0.0
    %574 = vmatprep.subr.mxu0 0.0
    %575 = vmatpush1.msra.mxu0 0.0
    %576 = vmatprep.subr.mxu0 0.0
    %577 = vmatpush1.msra.mxu0 0.0
    %578 = vmatprep.subr.mxu0 0.0
    %579 = vmatpush1.msra.mxu0 0.0
    %580 = vmatprep.subr.mxu0 0.0
    %581 = vmatpush1.msra.mxu0 0.0
    %582 = vmatprep.subr.mxu0 0.0
    %583 = vmatpush1.msra.mxu0 0.0
    %584 = vmatprep.subr.mxu0 0.0
    %585 = vmatpush1.msra.mxu0 0.0
    %586 = vmatprep.subr.mxu0 0.0
    %587 = vmatpush1.msra.mxu0 %v554
    %588 = vmatprep.subr.mxu0 0.0
    %589 = vmatpush2.msra.mxu0 0.0
    %590 = vmatprep.subr.mxu0 0.0
    %591 = vmatpush2.msra.mxu0 0.0
    %592 = vmatprep.subr.mxu0 0.0
    %593 = vmatpush2.msra.mxu0 0.0
    %594 = vmatprep.subr.mxu0 0.0
    %595 = vmatpush2.msra.mxu0 0.0
    %596 = vmatprep.subr.mxu0 0.0
    %597 = vmatpush2.msra.mxu0 0.0
    %598 = vmatprep.subr.mxu0 0.0
    %599 = vmatpush2.msra.mxu0 0.0
    %600 = vmatprep.subr.mxu0 0.0
    %601 = vmatpush2.msra.mxu0 0.0
    %602 = vmatprep.subr.mxu0 0.0
    %603 = vmatpush2.msra.mxu0 0.0
    %604 = vmatprep.subr.mxu0 0.0
    %605 = vmatpush2.msra.mxu0 0.0
    %606 = vmatprep.subr.mxu0 0.0
    %607 = vmatpush2.msra.mxu0 0.0
    %608 = vmatprep.subr.mxu0 0.0
    %609 = vmatpush2.msra.mxu0 0.0
    %610 = vmatprep.subr.mxu0 0.0
    %611 = vmatpush2.msra.mxu0 0.0
    %612 = vmatprep.subr.mxu0 0.0
    %613 = vmatpush2.msra.mxu0 0.0
    %614 = vmatprep.subr.mxu0 0.0
    %615 = vmatpush2.msra.mxu0 0.0
    %616 = vmatprep.subr.mxu0 0.0
    %617 = vmatpush2.msra.mxu0 0.0
    %618 = vmatprep.subr.mxu0 0.0
    %619 = vmatpush2.msra.mxu0 0.0
    %620 = vmatprep.mubr.f32.mxu0 0.0
    %621 = vmatmul.mubr.f32.gmra.mxu0 %v551
    %v622 = vpop.f32.mrf.mxu0
    %v623 = vadd.f32 %v410, %v622
    %v624 = vpop.f32.mrf.mxu0
    %625 = vdwg.mxu0
    %v626 = vxor.u32 %v623, 2147483648
    %v627 = vmul.f32 %v626, 1.442695
    %v628 = vpow.pop %v627
    %v629 = vadd.f32 %v628, 1.0
    %v630 = vrcp.pop %v629
    %v631 = vmul.f32 1.0, %v630
    %s632 = scalar_lea.vmem %s1, 16
    %v633 = vld [vmem:[%s632] sm:$0xff]
    %v634 = vld [vmem:[%s632 + $0x8] sm:$0xff]
    %636 = vrot.lane.b32.xlu0 %v631, 16
    %v637 = vpop.permute.xlu0 %636
    %639 = vrot.lane.b32.xlu0 %v631, 32
    %v640 = vpop.permute.xlu0 %639
    %642 = vrot.lane.b32.xlu0 %v631, 48
    %v643 = vpop.permute.xlu0 %642
    %645 = vrot.lane.b32.xlu0 %v631, 64
    %v646 = vpop.permute.xlu0 %645
    %648 = vrot.lane.b32.xlu0 %v631, 80
    %v649 = vpop.permute.xlu0 %648
    %651 = vrot.lane.b32.xlu0 %v631, 96
    %v652 = vpop.permute.xlu0 %651
    %654 = vrot.lane.b32.xlu0 %v631, 112
    %v655 = vpop.permute.xlu0 %654
    %v657 = vsel %vm519, %v631, %v637
    %v658 = vsel %vm521, %v657, %v640
    %v659 = vsel %vm523, %v658, %v643
    %v660 = vsel %vm525, %v659, %v646
    %v661 = vsel %vm527, %v660, %v649
    %v662 = vsel %vm529, %v661, %v652
    %v663 = vsel %vm531, %v662, %v655
    %v664 = vmul.f32 %v633, %v663
    %v665 = vmul.f32 %v634, %v663
    %s666 = scalar_lea.vmem [#allocation2], 16
    %667 = vst [vmem:[%s666] sm:$0xff] %v664
    %668 = vst [vmem:[%s666 + $0x8] sm:$0xff] %v665
    // Predicated region
    $region30: #{tpu_custom_call.1} parent=1 // pred_check
      _
    $region31: #{tpu_custom_call.1} parent=1 // pred_check_branch
      %670 = sbr.rel (0) target = $region33
    $region32: #{tpu_custom_call.1} parent=1 // pred_region
      %s672 = ssub.s32 512, 512
      %673 = vsyncadd [#allocation3], %s672
      %s674 = sshll.u32 [#allocation2], 4
      %s675 = int_to_ptr.vmem [resolvable:$true] %s674
      %680 = dma.vmem_to_hbm [thread:$0]  %s675, 512, %s7, [#allocation3], 256, 256, 16
    $region33: #{tpu_custom_call.1} parent=1 // pred_fallthru
      _
    // Predicated region
    $region34: #{tpu_custom_call.1} parent=1 // pred_check
      _
    $region35: #{tpu_custom_call.1} parent=1 // pred_check_branch
      %682 = sbr.rel (0) target = $region37
    $region36: #{tpu_custom_call.1} parent=1 // pred_region
      %683 = dma.done [#allocation3], 512
    $region37: #{tpu_custom_call.1} parent=1 // pred_fallthru
      _
    %684 = vsyncpa [#allocation3], 1

</llo_original>
